<compile_context>
chip_gen: v7x
topology: tpu7x:2x2x1
jax: 0.10.0
libtpu: 0.0.40
codegen_flags: <defaults>
</compile_context>

<pallas_src>
import functools

import jax
import jax.numpy as jnp
from jax.experimental import pallas as pl
from jax.experimental.pallas import tpu as pltpu


def _getHW(size):
    if isinstance(size, int):
        return (size, size)
    return tuple(size)


def _round_up(x, m):
    return ((x + m - 1) // m) * m


def _linear_kernel(x_ref, w_ref, b_ref, o_ref):
    # x_ref: (TM, D) bf16 tile, w_ref: (D, Ep) bf16 (VMEM-resident),
    # b_ref: (1, Ep) f32, o_ref: (TM, Ep) bf16.
    # MXU matmul with f32 accumulation; bias added in f32; cast to bf16 only at
    # the store so bias precision is preserved.
    acc = jnp.dot(x_ref[...], w_ref[...], preferred_element_type=jnp.float32)
    o_ref[...] = (acc + b_ref[...]).astype(o_ref.dtype)


def _choose_tm(M, tm_target=1024):
    """Pick the row tile.

    ~tm_target rows (amortizes the ~0.35us per-step pipeline overhead), balanced
    across tiles so the ragged last block isn't mostly padding, and at least two
    tiles once M >= 1024 so the 'parallel' grid axis has work for both v7x
    TensorCores.  Returns either a multiple of 8 or the full extent M (both are
    legal block dims).
    """
    n_tiles = max(pl.cdiv(M, tm_target), 2 if M >= 1024 else 1)
    tm = _round_up(pl.cdiv(M, n_tiles), 8)
    if tm >= M:
        return M
    return tm


def _linear_pallas(x_bf, w_bf, b2d, out_E):
    """(M, D) bf16 @ (D, Ep) bf16 + (1, Ep) f32 bias -> (M, out_E) bf16."""
    M, D = x_bf.shape
    e_pad = w_bf.shape[1]

    tm = _choose_tm(M)

    # VMEM budget (v7x has only 64 MiB/TC): double-buffered x/out tiles +
    # (conservatively counted as double-buffered) resident weight + bias.
    fixed_bytes = 2 * D * e_pad * 2 + 2 * e_pad * 4

    def _tile_bytes(t):
        return 2 * t * D * 2 + 2 * t * e_pad * 2

    while tm > 64 and fixed_bytes + _tile_bytes(tm) > (48 << 20):
        tm = max(64, _round_up(tm // 2, 8))

    vmem_limit = int(min(max(fixed_bytes + _tile_bytes(tm) + (4 << 20),
                             16 << 20),
                         100 << 20))

    grid_m = pl.cdiv(M, tm)

    out = pl.pallas_call(
        _linear_kernel,
        out_shape=jax.ShapeDtypeStruct((M, e_pad), jnp.bfloat16),
        grid_spec=pltpu.PrefetchScalarGridSpec(
            num_scalar_prefetch=0,
            grid=(grid_m,),
            in_specs=[
                # x tile: pipelined over rows; the ragged last block is masked
                # by Pallas (no jnp.pad HBM round-trip).
                pl.BlockSpec((tm, D), lambda i: (i, 0)),
                # weight / bias: constant block index -> DMA'd once, resident.
                pl.BlockSpec((D, e_pad), lambda i: (0, 0)),
                pl.BlockSpec((1, e_pad), lambda i: (0, 0)),
            ],
            out_specs=pl.BlockSpec((tm, e_pad), lambda i: (i, 0)),
        ),
        compiler_params=pltpu.CompilerParams(
            # Rows are independent -> shardable across TensorCores on v7x
            # (no-op on single-TC v5e/v6e).
            dimension_semantics=("parallel",),
            vmem_limit_bytes=vmem_limit,
            # Let XLA fuse the patchify transpose + bf16 cast that produces x
            # into the pallas_call input stream instead of a separate HBM pass.
            allow_input_fusion=[True, False, False],
        ),
    )(x_bf, w_bf, b2d)

    if e_pad != out_E:
        out = out[:, :out_E]
    return out


@functools.partial(jax.jit, static_argnames=("patch_h", "patch_w", "embed_size"))
def _patch_embed_forward(x, w_bf, b2d, *, patch_h, patch_w, embed_size):
    B, C, H, W = x.shape
    h_patch = H // patch_h
    w_patch = W // patch_w
    # Patchify NCHW -> (B*N, P_h*P_w*C).  Under jit the reshape / transpose /
    # bf16 cast fuse into one HBM pass (and may fuse further into the kernel's
    # input DMA via allow_input_fusion).
    p = x.reshape(B, C, h_patch, patch_h, w_patch, patch_w)
    p = jnp.transpose(p, (0, 2, 4, 3, 5, 1))
    p = p.reshape(B * h_patch * w_patch, patch_h * patch_w * C)
    p = p.astype(jnp.bfloat16)
    out = _linear_pallas(p, w_bf, b2d, embed_size)
    return out.reshape(B, h_patch * w_patch, embed_size)


class PatchEmbeddingPallas:
    """JAX/Pallas equivalent of the PyTorch PatchEmbedding module."""

    def __init__(self, image_size, in_channels=3, patch_size=8, embed_size=128,
                 key=None):
        self.patch_size_h, self.patch_size_w = _getHW(patch_size)
        h, w = _getHW(image_size)
        assert h % self.patch_size_h == 0 and w % self.patch_size_w == 0, (
            "image_size should be divisible by patch_size")
        self.in_channels = in_channels
        self.embed_size = embed_size
        in_features = self.patch_size_h * self.patch_size_w * in_channels

        if key is None:
            key = jax.random.PRNGKey(0)
        k_w, k_b = jax.random.split(key)
        # Deterministic init mimicking nn.Linear's Kaiming-uniform-ish bounds.
        bound = 1.0 / (in_features ** 0.5)
        # f32 master params, stored (in_features, embed_size) so the kernel does
        # x @ W + b, equivalent to PyTorch's x @ weight.T + bias.
        self.weight = jax.random.uniform(
            k_w, (in_features, embed_size), jnp.float32, -bound, bound)
        self.bias = jax.random.uniform(
            k_b, (embed_size,), jnp.float32, -bound, bound)

        # One-time kernel-ready copies: bf16 weight / f32 bias, column-padded to
        # a lane multiple only when it helps (E >= 128 and not a multiple of
        # 128); for small E we keep the exact width and let stores be masked
        # rather than writing 4x padded bytes + an extra slice pass.
        E = embed_size
        e_pad = E if (E % 128 == 0 or E < 128) else _round_up(E, 128)
        w_p = self.weight if e_pad == E else jnp.pad(
            self.weight, ((0, 0), (0, e_pad - E)))
        b_p = self.bias if e_pad == E else jnp.pad(
            self.bias, ((0, e_pad - E),))
        self.w_kernel = w_p.astype(jnp.bfloat16)
        self.b_kernel = b_p.reshape(1, e_pad).astype(jnp.float32)

    def patch_image(self, x):
        # Pure-JAX reference patchify (same math as the PyTorch module).
        B, C, H, W = x.shape
        H_patch = H // self.patch_size_h
        W_patch = W // self.patch_size_w
        x = x.reshape(B, C, H_patch, self.patch_size_h, W_patch, self.patch_size_w)
        x = jnp.transpose(x, (0, 2, 4, 3, 5, 1))
        return x.reshape(B, H_patch * W_patch,
                         self.patch_size_h * self.patch_size_w * C)

    def __call__(self, x):
        # Output dtype is bf16 (accumulation and bias add are f32 in-kernel).
        return _patch_embed_forward(
            x, self.w_kernel, self.b_kernel,
            patch_h=self.patch_size_h, patch_w=self.patch_size_w,
            embed_size=self.embed_size)


if __name__ == "__main__":
    key = jax.random.PRNGKey(0)
    k_x, k_params = jax.random.split(key)

    # Small shapes: B=2, C=4, H=W=16, patch=8 -> 4 patches, patch_dim=256.
    B, C, H, W = 2, 4, 16, 16
    patch_size = 8
    embed_size = 32

    x = jax.random.normal(k_x, (B, C, H, W), dtype=jnp.float32)

    module = PatchEmbeddingPallas(
        image_size=(H, W), in_channels=C, patch_size=patch_size,
        embed_size=embed_size, key=k_params)

    out = jax.block_until_ready(module(x))

    n_patches = (H // patch_size) * (W // patch_size)
    assert out.shape == (B, n_patches, embed_size), out.shape
    assert out.dtype == jnp.bfloat16, out.dtype

    # Reference check in plain JAX (same math as torch Linear on patches).
    # Tolerance covers bf16 MXU inputs and the bf16 output store (accumulation
    # and bias add are f32 in-kernel).
    ref = module.patch_image(x) @ module.weight + module.bias
    out_f32 = out.astype(jnp.float32)
    max_err = float(jnp.max(jnp.abs(out_f32 - ref)))
    assert jnp.allclose(out_f32, ref, atol=5e-2, rtol=5e-2), max_err

    print("KERNEL_OK")
</pallas_src>

<mosaic_0001>
module attributes {stable_mosaic.version = 11 : i64} {
  func.func @_linear_kernel(%arg0: i32, %arg1: memref<8x256xbf16, #tpu.memory_space<vmem>>, %arg2: memref<256x32xbf16, #tpu.memory_space<vmem>>, %arg3: memref<1x32xf32, #tpu.memory_space<vmem>>, %arg4: memref<8x32xbf16, #tpu.memory_space<vmem>>) attributes {dimension_semantics = [#tpu.dimension_semantics<parallel>], iteration_bounds = array<i64: 1>, scalar_prefetch = 0 : i64, scratch_operands = 0 : i64, tpu.core_type = #tpu.core_type<tc>, window_params = [{transform_indices = @transform_0, window_bounds = array<i64: 8, 256>}, {pipeline_mode = #tpu.pipeline_mode<synchronous>, transform_indices = @transform_1, window_bounds = array<i64: 256, 32>}, {pipeline_mode = #tpu.pipeline_mode<synchronous>, transform_indices = @transform_2, window_bounds = array<i64: 1, 32>}, {transform_indices = @transform_3, window_bounds = array<i64: 8, 32>}]} {
    %c0 = arith.constant 0 : index
    %c0_0 = arith.constant 0 : index
    %0 = vector.load %arg1[%c0, %c0_0] : memref<8x256xbf16, #tpu.memory_space<vmem>>, vector<8x256xbf16>
    %c0_1 = arith.constant 0 : index
    %c0_2 = arith.constant 0 : index
    %1 = vector.load %arg2[%c0_1, %c0_2] : memref<256x32xbf16, #tpu.memory_space<vmem>>, vector<256x32xbf16>
    %cst = arith.constant dense<0.000000e+00> : vector<8x32xf32>
    %2 = tpu.matmul %0, %1, %cst {dimension_numbers = #tpu.dot_dimension_numbers<[1], [0], [0], [1], [0, 0, 1, 1], [], []>} : vector<8x256xbf16>, vector<256x32xbf16>, vector<8x32xf32> -> vector<8x32xf32>
    %c0_3 = arith.constant 0 : index
    %c0_4 = arith.constant 0 : index
    %3 = vector.load %arg3[%c0_3, %c0_4] : memref<1x32xf32, #tpu.memory_space<vmem>>, vector<1x32xf32>
    %4 = vector.broadcast %3 : vector<1x32xf32> to vector<8x32xf32>
    %5 = arith.addf %2, %4 : vector<8x32xf32>
    %6 = arith.truncf %5 : vector<8x32xf32> to vector<8x32xbf16>
    %c0_5 = arith.constant 0 : index
    %c0_6 = arith.constant 0 : index
    %7 = vector.load %arg4[%c0_5, %c0_6] : memref<8x32xbf16, #tpu.memory_space<vmem>>, vector<8x32xbf16>
    tpu.vector_store %arg4[%c0_5, %c0_6], %6 {strides = array<i32>} : memref<8x32xbf16, #tpu.memory_space<vmem>>, vector<8x32xbf16>,
    return
  }
  func.func @transform_0(%arg0: i32) -> (i32, i32) {
    %c0_i32 = arith.constant 0 : i32
    %c0_i32_0 = arith.constant 0 : i32
    return %arg0, %c0_i32 : i32, i32
  }
  func.func @transform_1(%arg0: i32) -> (i32, i32) {
    %c0_i32 = arith.constant 0 : i32
    %c0_i32_0 = arith.constant 0 : i32
    %c0_i32_1 = arith.constant 0 : i32
    return %c0_i32, %c0_i32_0 : i32, i32
  }
  func.func @transform_2(%arg0: i32) -> (i32, i32) {
    %c0_i32 = arith.constant 0 : i32
    %c0_i32_0 = arith.constant 0 : i32
    %c0_i32_1 = arith.constant 0 : i32
    return %c0_i32, %c0_i32_0 : i32, i32
  }
  func.func @transform_3(%arg0: i32) -> (i32, i32) {
    %c0_i32 = arith.constant 0 : i32
    %c0_i32_0 = arith.constant 0 : i32
    return %arg0, %c0_i32 : i32, i32
  }
}

</mosaic_0001>

<llo_original>
// kernel: _patch_embed_forward.1
$region0: #{_patch_embed_forward.1}
  #allocation0 [shape = 'u32[]', space=smem, size = 0x4, offset = 0x4, fixed_abs, tag = 'smem constant byte address 0x4 - core index']
  #allocation1 [shape = 'u32[144,128]{1,0:T(1,128)}', space=vmem, size = 0x12000, scoped, tag = 'internal scratch']
  %s0 = inlined_call_operand.vmem [shape: bf16[8,256], index: 0, kind: input, shape index: {}]
  %s1 = inlined_call_operand.vmem [shape: bf16[256,32], index: 1, kind: input, shape index: {}]
  %s2 = inlined_call_operand.vmem [shape: f32[1,32], index: 2, kind: input, shape index: {}]
  %s3 = inlined_call_operand.hbm [shape: bf16[8,32], index: 3, kind: output, shape index: {}]
  %s4 = sld [smem:[#allocation0]]
  $region22: #{_patch_embed_forward.1} parent=0
    _
  %s6 = ssub.s32 1, %s4
  %s7 = scalar_select 0, %s6, %s4
  $region1: #{_patch_embed_forward.1} parent=0
    #allocation2 [shape = 'u8[2048]{0}', space=vmem, size = 0x800, scoped, tag = 'output window, operand 0, single buffered']
    #allocation3 [shape = 's32[1]{0}', space=sflag, size = 0x4, scoped, tag = 'scoped memory for _patch_embed_forward.1']
    %8 = vsyncpa [#allocation3], 0
    // Predicated region
    $region2: #{_patch_embed_forward.1} parent=1 // pred_check
      _
    $region3: #{_patch_embed_forward.1} parent=1 // pred_check_branch
      %10 = sbr.rel (0) target = $region5
    $region4: #{_patch_embed_forward.1} parent=1 // pred_region
      _
    $region5: #{_patch_embed_forward.1} parent=1 // pred_fallthru
      _
    // Predicated region
    $region6: #{_patch_embed_forward.1} parent=1 // pred_check
      _
    $region7: #{_patch_embed_forward.1} parent=1 // pred_check_branch
      %12 = sbr.rel (0) target = $region9
    $region8: #{_patch_embed_forward.1} parent=1 // pred_region
      _
    $region9: #{_patch_embed_forward.1} parent=1 // pred_fallthru
      _
    // Predicated region
    $region10: #{_patch_embed_forward.1} parent=1 // pred_check
      _
    $region11: #{_patch_embed_forward.1} parent=1 // pred_check_branch
      %14 = sbr.rel (0) target = $region13
    $region12: #{_patch_embed_forward.1} parent=1 // pred_region
      _
    $region13: #{_patch_embed_forward.1} parent=1 // pred_fallthru
      _
    %v16 = vld [vmem:[%s0] sm:$0xff]
    %v17 = vld [vmem:[%s1] sm:$0xf]
    %v18 = vld [vmem:[%s1 + $0x4] sm:$0xf]
    %v19 = vld [vmem:[%s1 + $0x8] sm:$0xf]
    %v20 = vld [vmem:[%s1 + $0xc] sm:$0xf]
    %v21 = vld [vmem:[%s1 + $0x10] sm:$0xf]
    %v22 = vld [vmem:[%s1 + $0x14] sm:$0xf]
    %v23 = vld [vmem:[%s1 + $0x18] sm:$0xf]
    %v24 = vld [vmem:[%s1 + $0x1c] sm:$0xf]
    %v25 = vld [vmem:[%s1 + $0x20] sm:$0xf]
    %v26 = vld [vmem:[%s1 + $0x24] sm:$0xf]
    %v27 = vld [vmem:[%s1 + $0x28] sm:$0xf]
    %v28 = vld [vmem:[%s1 + $0x2c] sm:$0xf]
    %v29 = vld [vmem:[%s1 + $0x30] sm:$0xf]
    %v30 = vld [vmem:[%s1 + $0x34] sm:$0xf]
    %v31 = vld [vmem:[%s1 + $0x38] sm:$0xf]
    %v32 = vld [vmem:[%s1 + $0x3c] sm:$0xf]
    %v33 = vld [vmem:[%s1 + $0x40] sm:$0xf]
    %v34 = vld [vmem:[%s1 + $0x44] sm:$0xf]
    %v35 = vld [vmem:[%s1 + $0x48] sm:$0xf]
    %v36 = vld [vmem:[%s1 + $0x4c] sm:$0xf]
    %v37 = vld [vmem:[%s1 + $0x50] sm:$0xf]
    %v38 = vld [vmem:[%s1 + $0x54] sm:$0xf]
    %v39 = vld [vmem:[%s1 + $0x58] sm:$0xf]
    %v40 = vld [vmem:[%s1 + $0x5c] sm:$0xf]
    %v41 = vld [vmem:[%s1 + $0x60] sm:$0xf]
    %v42 = vld [vmem:[%s1 + $0x64] sm:$0xf]
    %v43 = vld [vmem:[%s1 + $0x68] sm:$0xf]
    %v44 = vld [vmem:[%s1 + $0x6c] sm:$0xf]
    %v45 = vld [vmem:[%s1 + $0x70] sm:$0xf]
    %v46 = vld [vmem:[%s1 + $0x74] sm:$0xf]
    %v47 = vld [vmem:[%s1 + $0x78] sm:$0xf]
    %v48 = vld [vmem:[%s1 + $0x7c] sm:$0xf]
    %v49 = vld [vmem:[%s2] sm:$0x1]
    %v51 = vlaneseq
    %v52 = vshrl.u32 %v51, 7
    %v53 = vsub.s32 0, %v52
    %v54 = vrot.slane %v49, %v53
    %v57 = vunpack.c.l.b16 %v16
    %v58 = vunpack.c.h.b16 %v16
    %v59 = vpack.c.b16 %v57, %v57
    %v60 = vpack.c.b16 %v58, %v58
    %v95 = vunpack.c.l.b16 %v17
    %v96 = vunpack.c.l.b16 %v18
    %v97 = vunpack.c.l.b16 %v19
    %v98 = vunpack.c.l.b16 %v20
    %v99 = vunpack.c.l.b16 %v21
    %v100 = vunpack.c.l.b16 %v22
    %v101 = vunpack.c.l.b16 %v23
    %v102 = vunpack.c.l.b16 %v24
    %v103 = vunpack.c.l.b16 %v25
    %v104 = vunpack.c.l.b16 %v26
    %v105 = vunpack.c.l.b16 %v27
    %v106 = vunpack.c.l.b16 %v28
    %v107 = vunpack.c.l.b16 %v29
    %v108 = vunpack.c.l.b16 %v30
    %v109 = vunpack.c.l.b16 %v31
    %v110 = vunpack.c.l.b16 %v32
    %v111 = vunpack.c.l.b16 %v33
    %v112 = vunpack.c.l.b16 %v34
    %v113 = vunpack.c.l.b16 %v35
    %v114 = vunpack.c.l.b16 %v36
    %v115 = vunpack.c.l.b16 %v37
    %v116 = vunpack.c.l.b16 %v38
    %v117 = vunpack.c.l.b16 %v39
    %v118 = vunpack.c.l.b16 %v40
    %v119 = vunpack.c.l.b16 %v41
    %v120 = vunpack.c.l.b16 %v42
    %v121 = vunpack.c.l.b16 %v43
    %v122 = vunpack.c.l.b16 %v44
    %v123 = vunpack.c.l.b16 %v45
    %v124 = vunpack.c.l.b16 %v46
    %v125 = vunpack.c.l.b16 %v47
    %v126 = vunpack.c.l.b16 %v48
    %v127 = vpack.c.b16 %v96, %v95
    %v128 = vpack.c.b16 %v98, %v97
    %v129 = vpack.c.b16 %v100, %v99
    %v130 = vpack.c.b16 %v102, %v101
    %v131 = vpack.c.b16 %v104, %v103
    %v132 = vpack.c.b16 %v106, %v105
    %v133 = vpack.c.b16 %v108, %v107
    %v134 = vpack.c.b16 %v110, %v109
    %v135 = vpack.c.b16 %v112, %v111
    %v136 = vpack.c.b16 %v114, %v113
    %v137 = vpack.c.b16 %v116, %v115
    %v138 = vpack.c.b16 %v118, %v117
    %v139 = vpack.c.b16 %v120, %v119
    %v140 = vpack.c.b16 %v122, %v121
    %v141 = vpack.c.b16 %v124, %v123
    %v142 = vpack.c.b16 %v126, %v125
    %159 = vmatprep.subr.bf16.mxu0 0
    %160 = vmatpush1.bf16.msra.mxu0 %v127
    %161 = vmatprep.subr.bf16.mxu0 0
    %162 = vmatpush1.bf16.msra.mxu0 %v128
    %163 = vmatprep.subr.bf16.mxu0 0
    %164 = vmatpush1.bf16.msra.mxu0 %v129
    %165 = vmatprep.subr.bf16.mxu0 0
    %166 = vmatpush1.bf16.msra.mxu0 %v130
    %167 = vmatprep.subr.bf16.mxu0 0
    %168 = vmatpush1.bf16.msra.mxu0 %v131
    %169 = vmatprep.subr.bf16.mxu0 0
    %170 = vmatpush1.bf16.msra.mxu0 %v132
    %171 = vmatprep.subr.bf16.mxu0 0
    %172 = vmatpush1.bf16.msra.mxu0 %v133
    %173 = vmatprep.subr.bf16.mxu0 0
    %174 = vmatpush1.bf16.msra.mxu0 %v134
    %175 = vmatprep.subr.bf16.mxu0 0
    %176 = vmatpush1.bf16.msra.mxu0 %v135
    %177 = vmatprep.subr.bf16.mxu0 0
    %178 = vmatpush1.bf16.msra.mxu0 %v136
    %179 = vmatprep.subr.bf16.mxu0 0
    %180 = vmatpush1.bf16.msra.mxu0 %v137
    %181 = vmatprep.subr.bf16.mxu0 0
    %182 = vmatpush1.bf16.msra.mxu0 %v138
    %183 = vmatprep.subr.bf16.mxu0 0
    %184 = vmatpush1.bf16.msra.mxu0 %v139
    %185 = vmatprep.subr.bf16.mxu0 0
    %186 = vmatpush1.bf16.msra.mxu0 %v140
    %187 = vmatprep.subr.bf16.mxu0 0
    %188 = vmatpush1.bf16.msra.mxu0 %v141
    %189 = vmatprep.subr.bf16.mxu0 0
    %190 = vmatpush1.bf16.msra.mxu0 %v142
    %191 = vmatprep.mubr.bf16.mxu0 %v60
    %192 = vmatmul.mubr.bf16.gmra.mrb[0].mxu0 %v59
    %v193 = vpop.f32.mrb[0].mxu0
    %v194 = vadd.f32 %v54, %v193
    %v195 = vpop.f32.mrb[0].mxu0
    %v196 = vpop.f32.mrb[0].mxu0
    %v197 = vpop.f32.mrb[0].mxu0
    %198 = vdwg.mxu0
    %v199 = vpack.c.bf16 %v194, %v194
    %vm200 = vcmask 257024
    %201 = vst.msk [vmem:[#allocation2] sm:$0xf] %vm200, %v199
    // Predicated region
    $region14: #{_patch_embed_forward.1} parent=1 // pred_check
      _
    $region15: #{_patch_embed_forward.1} parent=1 // pred_check_branch
      %203 = sbr.rel (0) target = $region17
    $region16: #{_patch_embed_forward.1} parent=1 // pred_region
      %s205 = ssub.s32 64, 64
      %206 = vsyncadd [#allocation3], %s205
      %s208 = sshll.u32 [#allocation2], 4
      %s209 = int_to_ptr.vmem [resolvable:$true] %s208
      %211 = dma.vmem_to_hbm [thread:$0]  %s209, 64, %s3, [#allocation3]
    $region17: #{_patch_embed_forward.1} parent=1 // pred_fallthru
      _
    // Predicated region
    $region18: #{_patch_embed_forward.1} parent=1 // pred_check
      _
    $region19: #{_patch_embed_forward.1} parent=1 // pred_check_branch
      %213 = sbr.rel (0) target = $region21
    $region20: #{_patch_embed_forward.1} parent=1 // pred_region
      %214 = dma.done [#allocation3], 64
    $region21: #{_patch_embed_forward.1} parent=1 // pred_fallthru
      _
    %215 = vsyncpa [#allocation3], 1

</llo_original>
